<compile_context>
chip_gen: v7x
topology: tpu7x:2x2x1
jax: 0.10.0
libtpu: 0.0.40
codegen_flags: <defaults>
</compile_context>

<pallas_src>
import functools

import numpy as np
import jax
import jax.numpy as jnp
from jax.experimental import pallas as pl
from jax.experimental.pallas import tpu as pltpu

_SUBLANE = 8


def _round_up(x, m):
    return ((x + m - 1) // m) * m


_ACT_ALIASES = {"leakyrelu": "leaky_relu", "leaky relu": "leaky_relu"}


def _canon_act(name):
    return _ACT_ALIASES.get(name.lower().strip(), name.lower().strip())


def _apply_act(h, act):
    """Elementwise / row-local activations. Used both in-kernel and as the JAX ref."""
    if act in (None, "linear", "identity"):
        return h
    if act == "relu":
        return jnp.maximum(h, 0.0)
    if act == "leaky_relu":
        return jnp.where(h > 0, h, 0.01 * h)
    if act in ("shifted_softplus", "softplus"):
        sp = jnp.maximum(h, 0.0) + jnp.log(1.0 + jnp.exp(-jnp.abs(h)))
        if act == "shifted_softplus":
            sp = sp - jnp.log(2.0).astype(sp.dtype)
        return sp
    if act == "sigmoid":
        return jax.nn.sigmoid(h)
    if act == "tanh":
        return jnp.tanh(h)
    if act == "softmax":
        m = jnp.max(h, axis=-1, keepdims=True)
        e = jnp.exp(h - m)
        return e / jnp.sum(e, axis=-1, keepdims=True)
    # TODO(synk): add further nff activations here if a config ever uses them.
    raise NotImplementedError(f"activation '{act}' not supported")


# ---------------------------------------------------------------------------
# Kernel: one row-tile of x through one head's full MLP stack
# ---------------------------------------------------------------------------

def _head_mlp_kernel(x_ref, *refs, structure):
    o_ref = refs[-1]
    lin_refs = refs[:-1]           # (w0, b0, w1, b1, ...) for the current head
    h = x_ref[...]
    li = 0
    for op in structure:
        if op == "linear":
            w = lin_refs[2 * li][...]
            b = lin_refs[2 * li + 1][...]
            h = jnp.dot(h, w, preferred_element_type=jnp.float32) + b
            li += 1
        else:
            h = _apply_act(h, op)
    o_ref[...] = h.astype(o_ref.dtype)


# ---------------------------------------------------------------------------
# Wrapper: one fused pallas_call per group of identically-structured heads
# ---------------------------------------------------------------------------

def _pick_block_rows(n, per_row_bytes, quantum, target_bytes=2 * 1024 * 1024):
    # Target ~2 MiB streaming tiles for large N ...
    budget = max(quantum, (target_bytes // max(per_row_bytes, 1)) // quantum * quantum)
    # ... but keep >= ~4 row-grid steps so both v7x TensorCores get work.
    split = _round_up(max(pl.cdiv(n, 4), 1), quantum)
    rows = min(budget, split)
    rows = max(quantum, min(rows, _round_up(n, quantum)))
    return int(rows)


@functools.partial(jax.jit, static_argnames=("structure",))
def _group_forward(x, ws, bs, *, structure):
    n, f = x.shape
    num_heads = int(ws[0].shape[0])
    o = int(ws[-1].shape[-1])
    dtype_bytes = x.dtype.itemsize
    quantum = max(_SUBLANE, 32 // max(dtype_bytes, 1))   # 8 for f32, 16 for bf16

    widths = [f] + [int(w.shape[-1]) for w in ws]
    per_row = (f + o) * dtype_bytes + max(widths) * 4    # streamed io + f32 temps
    block_rows = _pick_block_rows(n, per_row, quantum)
    grid = (pl.cdiv(n, block_rows), num_heads)           # heads innermost: x stays resident

    in_specs = [pl.BlockSpec((block_rows, f), lambda i, h: (i, 0))]
    args = [x]
    weight_bytes = 0
    for w, b in zip(ws, bs):
        fin, fout = int(w.shape[1]), int(w.shape[2])
        in_specs.append(pl.BlockSpec((None, fin, fout), lambda i, h: (h, 0, 0)))
        in_specs.append(pl.BlockSpec((None, 1, fout), lambda i, h: (h, 0, 0)))
        args += [w, b]
        weight_bytes += (fin * fout + fout) * int(w.dtype.itemsize)

    out_spec = pl.BlockSpec((None, block_rows, o), lambda i, h: (h, i, 0))

    # Honest per-step VMEM budget: double-buffered x/out streams + double-buffered
    # per-head weights + f32 intermediates; 2x headroom, clamped to 32 MiB (v7x-safe).
    need = (2 * block_rows * (f + o) * dtype_bytes
            + 2 * weight_bytes
            + 2 * block_rows * max(widths) * 4)
    vmem_limit = int(min(max(2 * need, 16 * 1024 * 1024), 32 * 1024 * 1024))

    flops = 2 * n * num_heads * sum(int(w.shape[1]) * int(w.shape[2]) for w in ws)
    bytes_accessed = (n * f * dtype_bytes
                      + num_heads * n * o * dtype_bytes
                      + num_heads * weight_bytes)
    cost = pl.CostEstimate(flops=flops, transcendentals=0, bytes_accessed=bytes_accessed)

    out = pl.pallas_call(
        functools.partial(_head_mlp_kernel, structure=structure),
        out_shape=jax.ShapeDtypeStruct((num_heads, n, o), x.dtype),
        grid=grid,
        in_specs=in_specs,
        out_specs=out_spec,
        compiler_params=pltpu.CompilerParams(
            dimension_semantics=("parallel", "arbitrary"),
            vmem_limit_bytes=vmem_limit,
        ),
        cost_estimate=cost,
    )(*args)
    return out                       # (num_heads, n, o)


# ---------------------------------------------------------------------------
# Module
# ---------------------------------------------------------------------------

class NodeMultiTaskReadOut:
    """JAX/Pallas equivalent of nff NodeMultiTaskReadOut.

    Each task key maps to a stack of layers ({'name': 'linear', 'param': ...}
    or an activation name).  forward(r) returns {key: head(r)}.
    """

    def __init__(self, multitaskdict, post_readout=None, rng_key=None):
        self.multitaskdict = multitaskdict
        self.post_readout = post_readout
        if rng_key is None:
            rng_key = jax.random.PRNGKey(0)
        key = rng_key

        # Build per-task op lists with initialized parameters.
        self.task_ops = {}
        for task in multitaskdict:
            ops = []
            for layer in multitaskdict[task]:
                name = layer["name"].lower()
                if name == "linear":
                    fin = layer["param"]["in_features"]
                    fout = layer["param"]["out_features"]
                    key, k1, k2 = jax.random.split(key, 3)
                    bound = 1.0 / np.sqrt(fin)
                    w = jax.random.uniform(k1, (fin, fout), jnp.float32, -bound, bound)
                    b = jax.random.uniform(k2, (fout,), jnp.float32, -bound, bound)
                    ops.append(("linear", w, b))
                else:
                    ops.append(("act", _canon_act(name)))
            self.task_ops[task] = ops

        # Group tasks with identical structure so all heads in a group run in a
        # single fused pallas_call; stack + upload their weights ONCE here.
        self.groups = []           # dicts: keys / structure / ws / bs
        self.jax_only_tasks = []   # tasks with no linear layer (plain JAX)
        sig_to_group = {}
        for task, ops in self.task_ops.items():
            structure = tuple("linear" if op[0] == "linear" else op[1] for op in ops)
            if "linear" not in structure:
                self.jax_only_tasks.append(task)
                continue
            shapes = tuple(op[1].shape for op in ops if op[0] == "linear")
            sig = (structure, shapes)
            if sig not in sig_to_group:
                g = {"keys": [], "structure": structure, "w_list": [], "b_list": []}
                sig_to_group[sig] = g
                self.groups.append(g)
            g = sig_to_group[sig]
            g["keys"].append(task)
            g["w_list"].append([op[1] for op in ops if op[0] == "linear"])
            g["b_list"].append([op[2] for op in ops if op[0] == "linear"])

        for g in self.groups:
            n_heads = len(g["keys"])
            n_lin = len(g["w_list"][0])
            g["ws"] = tuple(
                jnp.stack([g["w_list"][h][l] for h in range(n_heads)])          # (H, fin, fout)
                for l in range(n_lin))
            g["bs"] = tuple(
                jnp.stack([g["b_list"][h][l].reshape(1, -1) for h in range(n_heads)])  # (H, 1, fout)
                for l in range(n_lin))
            del g["w_list"], g["b_list"]

    def __call__(self, r):
        predict_dict = {}
        for g in self.groups:
            out = _group_forward(r, g["ws"], g["bs"], structure=g["structure"])
            for hi, task in enumerate(g["keys"]):
                predict_dict[task] = out[hi]
        for task in self.jax_only_tasks:
            h = r
            for op in self.task_ops[task]:
                h = _apply_act(h, op[1])
            predict_dict[task] = h
        # Preserve the original key ordering of multitaskdict.
        predict_dict = {k: predict_dict[k] for k in self.multitaskdict}
        if self.post_readout is not None:
            # TODO(synk): post_readout is arbitrary user python; it runs outside
            # the kernel exactly like the PyTorch version.
            predict_dict = self.post_readout(predict_dict)
        return predict_dict


# ---------------------------------------------------------------------------
# Demo / correctness check
# ---------------------------------------------------------------------------

if __name__ == "__main__":
    multitaskdict = {
        "myenergy_0": [
            {"name": "linear", "param": {"in_features": 5, "out_features": 20}},
            {"name": "linear", "param": {"in_features": 20, "out_features": 1}},
        ],
        "myenergy_1": [
            {"name": "linear", "param": {"in_features": 5, "out_features": 20}},
            {"name": "linear", "param": {"in_features": 20, "out_features": 1}},
        ],
        "muliken_charges": [
            {"name": "linear", "param": {"in_features": 5, "out_features": 20}},
            {"name": "ReLU"},
            {"name": "linear", "param": {"in_features": 20, "out_features": 1}},
        ],
        "site_probs": [
            {"name": "linear", "param": {"in_features": 5, "out_features": 20}},
            {"name": "shifted_softplus"},
            {"name": "linear", "param": {"in_features": 20, "out_features": 4}},
            {"name": "softmax"},
        ],
    }

    model = NodeMultiTaskReadOut(multitaskdict)

    # Small node-feature tensor: 40 atoms, 5 features.
    r = jax.random.normal(jax.random.PRNGKey(0), (40, 5), dtype=jnp.float32)

    out = model(r)
    out = jax.block_until_ready(out)

    # Pure-JAX reference (same activation formulas, applied outside the kernel).
    for task, ops in model.task_ops.items():
        ref = r
        for op in ops:
            if op[0] == "linear":
                ref = ref @ op[1] + op[2]
            else:
                ref = _apply_act(ref, op[1])
        assert out[task].shape == ref.shape, f"shape mismatch for {task}"
        assert jnp.allclose(out[task], ref, atol=1e-3, rtol=1e-3), f"mismatch for {task}"

    print("KERNEL_OK")
</pallas_src>

<mosaic_0001>
module attributes {stable_mosaic.version = 11 : i64} {
  func.func @_head_mlp_kernel(%arg0: i32, %arg1: i32, %arg2: memref<16x5xf32, #tpu.memory_space<vmem>>, %arg3: memref<1x5x20xf32, #tpu.memory_space<vmem>>, %arg4: memref<1x1x20xf32, #tpu.memory_space<vmem>>, %arg5: memref<1x20x1xf32, #tpu.memory_space<vmem>>, %arg6: memref<1x1x1xf32, #tpu.memory_space<vmem>>, %arg7: memref<1x16x1xf32, #tpu.memory_space<vmem>>) attributes {dimension_semantics = [#tpu.dimension_semantics<parallel>, #tpu.dimension_semantics<arbitrary>], iteration_bounds = array<i64: 3, 2>, scalar_prefetch = 0 : i64, scratch_operands = 0 : i64, tpu.core_type = #tpu.core_type<tc>, window_params = [{transform_indices = @transform_0, window_bounds = array<i64: 16, 5>}, {transform_indices = @transform_1, window_bounds = array<i64: 1, 5, 20>}, {transform_indices = @transform_2, window_bounds = array<i64: 1, 1, 20>}, {transform_indices = @transform_3, window_bounds = array<i64: 1, 20, 1>}, {transform_indices = @transform_4, window_bounds = array<i64: 1, 1, 1>}, {transform_indices = @transform_5, window_bounds = array<i64: 1, 16, 1>}]} {
    %c0 = arith.constant 0 : index
    %c0_0 = arith.constant 0 : index
    %0 = vector.load %arg2[%c0, %c0_0] : memref<16x5xf32, #tpu.memory_space<vmem>>, vector<16x5xf32>
    %c0_1 = arith.constant 0 : index
    %c0_2 = arith.constant 0 : index
    %c0_3 = arith.constant 0 : index
    %1 = vector.load %arg3[%c0_1, %c0_2, %c0_3] : memref<1x5x20xf32, #tpu.memory_space<vmem>>, vector<1x5x20xf32>
    %2 = vector.shape_cast %1 : vector<1x5x20xf32> to vector<5x20xf32>
    %c0_4 = arith.constant 0 : index
    %c0_5 = arith.constant 0 : index
    %c0_6 = arith.constant 0 : index
    %3 = vector.load %arg4[%c0_4, %c0_5, %c0_6] : memref<1x1x20xf32, #tpu.memory_space<vmem>>, vector<1x1x20xf32>
    %4 = vector.shape_cast %3 : vector<1x1x20xf32> to vector<1x20xf32>
    %cst = arith.constant dense<0.000000e+00> : vector<16x20xf32>
    %5 = tpu.matmul %0, %2, %cst {dimension_numbers = #tpu.dot_dimension_numbers<[1], [0], [0], [1], [0, 0, 1, 1], [], []>} : vector<16x5xf32>, vector<5x20xf32>, vector<16x20xf32> -> vector<16x20xf32>
    %6 = vector.broadcast %4 : vector<1x20xf32> to vector<16x20xf32>
    %7 = arith.addf %5, %6 : vector<16x20xf32>
    %c0_7 = arith.constant 0 : index
    %c0_8 = arith.constant 0 : index
    %c0_9 = arith.constant 0 : index
    %8 = vector.load %arg5[%c0_7, %c0_8, %c0_9] : memref<1x20x1xf32, #tpu.memory_space<vmem>>, vector<1x20x1xf32>
    %9 = vector.shape_cast %8 : vector<1x20x1xf32> to vector<20x1xf32>
    %c0_10 = arith.constant 0 : index
    %c0_11 = arith.constant 0 : index
    %c0_12 = arith.constant 0 : index
    %10 = vector.load %arg6[%c0_10, %c0_11, %c0_12] : memref<1x1x1xf32, #tpu.memory_space<vmem>>, vector<1x1x1xf32>
    %11 = vector.shape_cast %10 : vector<1x1x1xf32> to vector<1x1xf32>
    %cst_13 = arith.constant dense<0.000000e+00> : vector<16x1xf32>
    %12 = tpu.matmul %7, %9, %cst_13 {dimension_numbers = #tpu.dot_dimension_numbers<[1], [0], [0], [1], [0, 0, 1, 1], [], []>} : vector<16x20xf32>, vector<20x1xf32>, vector<16x1xf32> -> vector<16x1xf32>
    %13 = vector.broadcast %11 : vector<1x1xf32> to vector<16x1xf32>
    %14 = arith.addf %12, %13 : vector<16x1xf32>
    %c0_14 = arith.constant 0 : index
    %c0_15 = arith.constant 0 : index
    %c0_16 = arith.constant 0 : index
    %15 = vector.load %arg7[%c0_14, %c0_15, %c0_16] : memref<1x16x1xf32, #tpu.memory_space<vmem>>, vector<1x16x1xf32>
    %16 = vector.shape_cast %15 : vector<1x16x1xf32> to vector<16x1xf32>
    %17 = vector.shape_cast %14 : vector<16x1xf32> to vector<1x16x1xf32>
    tpu.vector_store %arg7[%c0_14, %c0_15, %c0_16], %17 {strides = array<i32>} : memref<1x16x1xf32, #tpu.memory_space<vmem>>, vector<1x16x1xf32>,
    return
  }
  func.func @transform_0(%arg0: i32, %arg1: i32) -> (i32, i32) {
    %c0_i32 = arith.constant 0 : i32
    %c0_i32_0 = arith.constant 0 : i32
    return %arg0, %c0_i32 : i32, i32
  }
  func.func @transform_1(%arg0: i32, %arg1: i32) -> (i32, i32, i32) {
    %c0_i32 = arith.constant 0 : i32
    %c0_i32_0 = arith.constant 0 : i32
    %c0_i32_1 = arith.constant 0 : i32
    return %arg1, %c0_i32, %c0_i32_0 : i32, i32, i32
  }
  func.func @transform_2(%arg0: i32, %arg1: i32) -> (i32, i32, i32) {
    %c0_i32 = arith.constant 0 : i32
    %c0_i32_0 = arith.constant 0 : i32
    %c0_i32_1 = arith.constant 0 : i32
    return %arg1, %c0_i32, %c0_i32_0 : i32, i32, i32
  }
  func.func @transform_3(%arg0: i32, %arg1: i32) -> (i32, i32, i32) {
    %c0_i32 = arith.constant 0 : i32
    %c0_i32_0 = arith.constant 0 : i32
    %c0_i32_1 = arith.constant 0 : i32
    return %arg1, %c0_i32, %c0_i32_0 : i32, i32, i32
  }
  func.func @transform_4(%arg0: i32, %arg1: i32) -> (i32, i32, i32) {
    %c0_i32 = arith.constant 0 : i32
    %c0_i32_0 = arith.constant 0 : i32
    %c0_i32_1 = arith.constant 0 : i32
    return %arg1, %c0_i32, %c0_i32_0 : i32, i32, i32
  }
  func.func @transform_5(%arg0: i32, %arg1: i32) -> (i32, i32, i32) {
    %c0_i32 = arith.constant 0 : i32
    %c0_i32_0 = arith.constant 0 : i32
    return %arg1, %arg0, %c0_i32 : i32, i32, i32
  }
}

</mosaic_0001>

<llo_original>
// kernel: _group_forward.1
$region0: #{_group_forward.1}
  #allocation0 [shape = 'u32[]', space=smem, size = 0x4, offset = 0x4, fixed_abs, tag = 'smem constant byte address 0x4 - core index']
  #allocation1 [shape = 'u32[144,128]{1,0:T(1,128)}', space=vmem, size = 0x12000, scoped, tag = 'internal scratch']
  %s0 = inlined_call_operand.vmem [shape: f32[40,5], index: 0, kind: input, shape index: {}]
  %s1 = inlined_call_operand.vmem [shape: f32[2,5,20], index: 1, kind: input, shape index: {}]
  %s2 = inlined_call_operand.vmem [shape: f32[2,1,20], index: 2, kind: input, shape index: {}]
  %s3 = inlined_call_operand.vmem [shape: f32[2,20,1], index: 3, kind: input, shape index: {}]
  %s4 = inlined_call_operand.vmem [shape: f32[2,1,1], index: 4, kind: input, shape index: {}]
  %s5 = inlined_call_operand.vmem [shape: f32[2,40,1], index: 5, kind: output, shape index: {}]
  %s6 = sld [smem:[#allocation0]]
  $region101: #{_group_forward.1} parent=0
    _
  %s8 = ssub.s32 1, %s6
  %s9 = scalar_select 0, %s8, %s6
  $region1: #{_group_forward.1} parent=0
    #allocation2 [shape = 'u8[16384]{0}', space=vmem, size = 0x4000, scoped, tag = 'output window, operand 0']
    loop: start=0, step=1, limit=8
    $region2: #{_group_forward.1} parent=1 // loop_pre_header
      _
    $region3: #{_group_forward.1} parent=1 // loop_header
      %s11 = sphi 0, %s15
      %p12 = scmp.ge.s32.totalorder %s11, 8
      %s18 = sphi 0, %s30
      %s19 = sphi 0, %s26
      %s20 = sphi 0, %s18
      %s21 = sphi 0, %s19
      %s22 = sphi 0, %s20
      %s23 = sphi 0, %s21
      %s33 = sphi 0, %s35
      %s36 = sphi 0, %s33
      %s37 = sphi 0, %s36
      %s53 = sphi 0, %s37
      %s59 = sphi 0, %s61
      %s62 = sphi 0, %s59
      %s63 = sphi 0, %s62
      %s79 = sphi 0, %s63
      %s85 = sphi 0, %s87
      %s88 = sphi 0, %s85
      %s89 = sphi 0, %s88
      %s105 = sphi 0, %s89
      %s111 = sphi 0, %s113
      %s114 = sphi 0, %s111
      %s115 = sphi 0, %s114
      %s131 = sphi 0, %s115
      %s137 = sphi 0, %s139
      %s140 = sphi 0, %s137
      %s141 = sphi 0, %s140
      %s157 = sphi 0, %s141
      %s165 = sphi 0, %s167
      %s168 = sphi 0, %s165
      %s169 = sphi 0, %s168
      %s185 = sphi 0, %s169
    $region4: #{_group_forward.1} parent=1 // loop_header_branch
      %14 = sbr.rel (%p12) target = $region8
    $region5: #{_group_forward.1} parent=1 // loop_body
      %s16 = ssub.s32 %s11, 1
      %s17 = ssub.s32 %s11, 2
      %s24 = sadd.s32 1, %s19
      %p25 = scmp.ge.s32.totalorder %s24, 2
      %s26 = scalar_select %p25, 0, %s24
      %s27 = sadd.s32 1, %s18
      %s28 = scalar_select %p25, %s27, %s18
      %p29 = scmp.ge.s32.totalorder %s28, 3
      %s30 = scalar_select %p29, 0, %s28
      %s31 = ssub.s32 %s18, %s30
      %p32 = scmp.eq.s32.totalorder %s31, 0
      %s34 = sadd.s32 %s33, 1
      %s35 = scalar_select %p32, %s33, %s34
      %p38 = pneg %p32
      %p39 = scmp.eq.s32.totalorder %s11, 5
      %p40 = por %p38, %p39
      %p41 = scmp.ne.s32.totalorder %s33, %s36
      %p42 = scmp.eq.s32.totalorder %s11, 0
      %p43 = por %p41, %p42
      %p44 = scmp.ne.s32.totalorder %s33, %s36
      %p45 = scmp.eq.s32.totalorder %s16, 5
      %p46 = por %p44, %p45
      %p47 = scmp.ne.s32.totalorder %s36, %s37
      %p48 = scmp.eq.s32.totalorder %s16, 0
      %p49 = por %p47, %p48
      %p50 = scmp.ne.s32.totalorder %s36, %s37
      %p51 = scmp.eq.s32.totalorder %s17, 5
      %p52 = por %p50, %p51
      %p54 = scmp.ne.s32.totalorder %s37, %s53
      %p55 = scmp.eq.s32.totalorder %s17, 0
      %p56 = por %p54, %p55
      %s57 = ssub.s32 %s19, %s26
      %p58 = scmp.eq.s32.totalorder %s57, 0
      %s60 = sadd.s32 %s59, 1
      %s61 = scalar_select %p58, %s59, %s60
      %p64 = pneg %p58
      %p65 = scmp.eq.s32.totalorder %s11, 5
      %p66 = por %p64, %p65
      %p67 = scmp.ne.s32.totalorder %s59, %s62
      %p68 = scmp.eq.s32.totalorder %s11, 0
      %p69 = por %p67, %p68
      %p70 = scmp.ne.s32.totalorder %s59, %s62
      %p71 = scmp.eq.s32.totalorder %s16, 5
      %p72 = por %p70, %p71
      %p73 = scmp.ne.s32.totalorder %s62, %s63
      %p74 = scmp.eq.s32.totalorder %s16, 0
      %p75 = por %p73, %p74
      %p76 = scmp.ne.s32.totalorder %s62, %s63
      %p77 = scmp.eq.s32.totalorder %s17, 5
      %p78 = por %p76, %p77
      %p80 = scmp.ne.s32.totalorder %s63, %s79
      %p81 = scmp.eq.s32.totalorder %s17, 0
      %p82 = por %p80, %p81
      %s83 = ssub.s32 %s19, %s26
      %p84 = scmp.eq.s32.totalorder %s83, 0
      %s86 = sadd.s32 %s85, 1
      %s87 = scalar_select %p84, %s85, %s86
      %p90 = pneg %p84
      %p91 = scmp.eq.s32.totalorder %s11, 5
      %p92 = por %p90, %p91
      %p93 = scmp.ne.s32.totalorder %s85, %s88
      %p94 = scmp.eq.s32.totalorder %s11, 0
      %p95 = por %p93, %p94
      %p96 = scmp.ne.s32.totalorder %s85, %s88
      %p97 = scmp.eq.s32.totalorder %s16, 5
      %p98 = por %p96, %p97
      %p99 = scmp.ne.s32.totalorder %s88, %s89
      %p100 = scmp.eq.s32.totalorder %s16, 0
      %p101 = por %p99, %p100
      %p102 = scmp.ne.s32.totalorder %s88, %s89
      %p103 = scmp.eq.s32.totalorder %s17, 5
      %p104 = por %p102, %p103
      %p106 = scmp.ne.s32.totalorder %s89, %s105
      %p107 = scmp.eq.s32.totalorder %s17, 0
      %p108 = por %p106, %p107
      %s109 = ssub.s32 %s19, %s26
      %p110 = scmp.eq.s32.totalorder %s109, 0
      %s112 = sadd.s32 %s111, 1
      %s113 = scalar_select %p110, %s111, %s112
      %p116 = pneg %p110
      %p117 = scmp.eq.s32.totalorder %s11, 5
      %p118 = por %p116, %p117
      %p119 = scmp.ne.s32.totalorder %s111, %s114
      %p120 = scmp.eq.s32.totalorder %s11, 0
      %p121 = por %p119, %p120
      %p122 = scmp.ne.s32.totalorder %s111, %s114
      %p123 = scmp.eq.s32.totalorder %s16, 5
      %p124 = por %p122, %p123
      %p125 = scmp.ne.s32.totalorder %s114, %s115
      %p126 = scmp.eq.s32.totalorder %s16, 0
      %p127 = por %p125, %p126
      %p128 = scmp.ne.s32.totalorder %s114, %s115
      %p129 = scmp.eq.s32.totalorder %s17, 5
      %p130 = por %p128, %p129
      %p132 = scmp.ne.s32.totalorder %s115, %s131
      %p133 = scmp.eq.s32.totalorder %s17, 0
      %p134 = por %p132, %p133
      %s135 = ssub.s32 %s19, %s26
      %p136 = scmp.eq.s32.totalorder %s135, 0
      %s138 = sadd.s32 %s137, 1
      %s139 = scalar_select %p136, %s137, %s138
      %p142 = pneg %p136
      %p143 = scmp.eq.s32.totalorder %s11, 5
      %p144 = por %p142, %p143
      %p145 = scmp.ne.s32.totalorder %s137, %s140
      %p146 = scmp.eq.s32.totalorder %s11, 0
      %p147 = por %p145, %p146
      %p148 = scmp.ne.s32.totalorder %s137, %s140
      %p149 = scmp.eq.s32.totalorder %s16, 5
      %p150 = por %p148, %p149
      %p151 = scmp.ne.s32.totalorder %s140, %s141
      %p152 = scmp.eq.s32.totalorder %s16, 0
      %p153 = por %p151, %p152
      %p154 = scmp.ne.s32.totalorder %s140, %s141
      %p155 = scmp.eq.s32.totalorder %s17, 5
      %p156 = por %p154, %p155
      %p158 = scmp.ne.s32.totalorder %s141, %s157
      %p159 = scmp.eq.s32.totalorder %s17, 0
      %p160 = por %p158, %p159
      %s161 = ssub.s32 %s19, %s26
      %s162 = ssub.s32 %s18, %s30
      %s163 = sor.u32 %s161, %s162
      %p164 = scmp.eq.s32.totalorder %s163, 0
      %s166 = sadd.s32 %s165, 1
      %s167 = scalar_select %p164, %s165, %s166
      %p170 = pneg %p164
      %p171 = scmp.eq.s32.totalorder %s11, 5
      %p172 = por %p170, %p171
      %p173 = scmp.ne.s32.totalorder %s165, %s168
      %p174 = scmp.eq.s32.totalorder %s11, 0
      %p175 = por %p173, %p174
      %p176 = scmp.ne.s32.totalorder %s165, %s168
      %p177 = scmp.eq.s32.totalorder %s16, 5
      %p178 = por %p176, %p177
      %p179 = scmp.ne.s32.totalorder %s168, %s169
      %p180 = scmp.eq.s32.totalorder %s16, 0
      %p181 = por %p179, %p180
      %p182 = scmp.ne.s32.totalorder %s168, %s169
      %p183 = scmp.eq.s32.totalorder %s17, 5
      %p184 = por %p182, %p183
      %p186 = scmp.ne.s32.totalorder %s169, %s185
      %p187 = scmp.eq.s32.totalorder %s17, 0
      %p188 = por %p186, %p187
      %p189 = scmp.le.s32.totalorder 1, %s11
      %p190 = scmp.lt.s32.totalorder %s11, 7
      %p191 = pnand %p189, %p190
      %p192 = pneg %p191
      // Predicated region
      $region9: #{_group_forward.1} parent=5 // pred_check
        _
      $region10: #{_group_forward.1} parent=5 // pred_check_branch
        %194 = sbr.rel (%p191) target = $region12
      $region11: #{_group_forward.1} parent=5 // pred_region
        %s195 = ssub.s32 %s11, 1
      $region12: #{_group_forward.1} parent=5 // pred_fallthru
        _
      %p196 = scmp.lt.s32.totalorder %s11, 6
      // Predicated region
      $region13: #{_group_forward.1} parent=5 // pred_check
        %p197 = pneg %p196
      $region14: #{_group_forward.1} parent=5 // pred_check_branch
        %199 = sbr.rel (%p197) target = $region16
      $region15: #{_group_forward.1} parent=5 // pred_region
        // Predicated region
        $region17: #{_group_forward.1} parent=15 // pred_check
          %p200 = pneg %p43
        $region18: #{_group_forward.1} parent=15 // pred_check_branch
          %202 = sbr.rel (%p200) target = $region20
        $region19: #{_group_forward.1} parent=15 // pred_region
          %s203 = smul.u32 2, %s18
          %s204 = ssub.s32 5, %s203
          %p205 = scmp.lt.s32.totalorder %s204, 2
          %s206 = scalar_select %p205, %s204, 2
          %s207 = smul.u32 128, %s206
          %p208 = scmp.lt.s32.totalorder %s203, 4
          %s209 = scalar_select %p208, %s203, 4
          %s210 = smul.addr %s209, 8
          %s211 = scalar_lea.vmem %s0, %s210
          %s212 = smul.u32 2, %s18
          %s213 = ssub.s32 5, %s212
          %p214 = scmp.lt.s32.totalorder %s213, 2
          %s215 = scalar_select %p214, %s213, 2
          %s216 = smul.u32 128, %s215
        $region20: #{_group_forward.1} parent=15 // pred_fallthru
          _
        // Predicated region
        $region21: #{_group_forward.1} parent=15 // pred_check
          %p217 = pneg %p69
        $region22: #{_group_forward.1} parent=15 // pred_check_branch
          %219 = sbr.rel (%p217) target = $region24
        $region23: #{_group_forward.1} parent=15 // pred_region
          %p220 = scmp.lt.s32.totalorder %s19, 1
          %s221 = scalar_select %p220, %s19, 1
          %s222 = smul.addr %s221, 8
          %s223 = scalar_lea.vmem %s1, %s222
        $region24: #{_group_forward.1} parent=15 // pred_fallthru
          _
        // Predicated region
        $region25: #{_group_forward.1} parent=15 // pred_check
          %p224 = pneg %p95
        $region26: #{_group_forward.1} parent=15 // pred_check_branch
          %226 = sbr.rel (%p224) target = $region28
        $region27: #{_group_forward.1} parent=15 // pred_region
          %p227 = scmp.lt.s32.totalorder %s19, 1
          %s228 = scalar_select %p227, %s19, 1
          %s229 = scalar_lea.vmem %s2, %s228
        $region28: #{_group_forward.1} parent=15 // pred_fallthru
          _
        // Predicated region
        $region29: #{_group_forward.1} parent=15 // pred_check
          %p230 = pneg %p121
        $region30: #{_group_forward.1} parent=15 // pred_check_branch
          %232 = sbr.rel (%p230) target = $region32
        $region31: #{_group_forward.1} parent=15 // pred_region
          %p233 = scmp.lt.s32.totalorder %s19, 1
          %s234 = scalar_select %p233, %s19, 1
          %s235 = smul.addr %s234, 3
          %s236 = smul.addr %s235, 8
          %s237 = scalar_lea.vmem %s3, %s236
        $region32: #{_group_forward.1} parent=15 // pred_fallthru
          _
        // Predicated region
        $region33: #{_group_forward.1} parent=15 // pred_check
          %p238 = pneg %p147
        $region34: #{_group_forward.1} parent=15 // pred_check_branch
          %240 = sbr.rel (%p238) target = $region36
        $region35: #{_group_forward.1} parent=15 // pred_region
          %p241 = scmp.lt.s32.totalorder %s19, 1
          %s242 = scalar_select %p241, %s19, 1
          %s243 = scalar_lea.vmem %s4, %s242
        $region36: #{_group_forward.1} parent=15 // pred_fallthru
          _
      $region16: #{_group_forward.1} parent=5 // pred_fallthru
        _
      %p244 = scmp.le.s32.totalorder 1, %s11
      %p245 = scmp.lt.s32.totalorder %s11, 7
      %p246 = pnand %p244, %p245
      %p247 = pneg %p246
      // Predicated region
      $region37: #{_group_forward.1} parent=5 // pred_check
        _
      $region38: #{_group_forward.1} parent=5 // pred_check_branch
        %249 = sbr.rel (%p246) target = $region40
      $region39: #{_group_forward.1} parent=5 // pred_region
        %s250 = ssub.s32 %s11, 1
        %s251 = smul.u32 2, %s20
        %s252 = ssub.s32 5, %s251
        %p253 = scmp.lt.s32.totalorder %s252, 2
        %s254 = scalar_select %p253, %s252, 2
        %s255 = smul.u32 128, %s254
        %p256 = scmp.lt.s32.totalorder %s251, 4
        %s257 = scalar_select %p256, %s251, 4
        %s258 = smul.addr %s257, 8
        %s259 = scalar_lea.vmem %s0, %s258
        %p260 = pneg %p49
        %p261 = pneg %p46
        %p262 = scmp.lt.s32.totalorder %s21, 1
        %s263 = scalar_select %p262, %s21, 1
        %s264 = smul.addr %s263, 8
        %s265 = scalar_lea.vmem %s1, %s264
        %p266 = pneg %p75
        %p267 = pneg %p72
        %p268 = scmp.lt.s32.totalorder %s21, 1
        %s269 = scalar_select %p268, %s21, 1
        %s270 = scalar_lea.vmem %s2, %s269
        %p271 = pneg %p101
        %p272 = pneg %p98
        %p273 = scmp.lt.s32.totalorder %s21, 1
        %s274 = scalar_select %p273, %s21, 1
        %s275 = smul.addr %s274, 3
        %s276 = smul.addr %s275, 8
        %s277 = scalar_lea.vmem %s3, %s276
        %p278 = pneg %p127
        %p279 = pneg %p124
        %p280 = scmp.lt.s32.totalorder %s21, 1
        %s281 = scalar_select %p280, %s21, 1
        %s282 = scalar_lea.vmem %s4, %s281
        %p283 = pneg %p153
        %p284 = pneg %p150
        %p285 = pneg %p181
        %p286 = pneg %p178
        %s287 = sand.u32 %s168, 1
        %s288 = sand.u32 %s168, 1
        %s289 = smul.addr %s288, 16
        %s290 = scalar_lea.vmem [#allocation2], %s289
        %s291 = smul.u32 2, %s20
        %s292 = ssub.s32 5, %s291
        %p293 = scmp.lt.s32.totalorder %s292, 2
        %s294 = scalar_select %p293, %s292, 2
        %s295 = smul.u32 128, %s294
        %p296 = scmp.lt.s32.totalorder %s291, 4
        %s297 = scalar_select %p296, %s291, 4
        %s298 = smul.addr %s297, 8
        %s299 = scalar_lea.vmem %s0, %s298
        %s300 = smul.u32 2, %s20
        %s301 = ssub.s32 5, %s300
        %p302 = scmp.lt.s32.totalorder %s301, 2
        %s303 = scalar_select %p302, %s301, 2
        %s304 = smul.u32 128, %s303
        %p305 = scmp.lt.s32.totalorder %s21, 1
        %s306 = scalar_select %p305, %s21, 1
        %s307 = smul.addr %s306, 8
        %s308 = scalar_lea.vmem %s1, %s307
        %p309 = scmp.lt.s32.totalorder %s21, 1
        %s310 = scalar_select %p309, %s21, 1
        %s311 = scalar_lea.vmem %s2, %s310
        %p312 = scmp.lt.s32.totalorder %s21, 1
        %s313 = scalar_select %p312, %s21, 1
        %s314 = smul.addr %s313, 3
        %s315 = smul.addr %s314, 8
        %s316 = scalar_lea.vmem %s3, %s315
        %p317 = scmp.lt.s32.totalorder %s21, 1
        %s318 = scalar_select %p317, %s21, 1
        %s319 = scalar_lea.vmem %s4, %s318
        %s320 = smul.u32 2, %s20
        %s321 = ssub.s32 5, %s320
        %p322 = scmp.lt.s32.totalorder %s321, 2
        %s323 = scalar_select %p322, %s321, 2
        %s324 = smul.u32 128, %s323
        %v325 = vld [vmem:[%s299] sm:$0xff]
        %v326 = vld [vmem:[%s299 + $0x8] sm:$0xff]
        %v327 = vld [vmem:[%s308] sm:$0x1f]
        %v328 = vld [vmem:[%s311] sm:$0x1]
        %v330 = vlaneseq
        %v331 = vshrl.u32 %v330, 7
        %v332 = vsub.s32 0, %v331
        %v333 = vrot.slane %v328, %v332
        %vm335 = vcmask 39936
        %v337 = vsel %vm335, %v325, 0
        %v340 = vsel %vm335, %v326, 0
        %vm342 = vcmask 1044480
        %v344 = vsel %vm342, %v327, 0
        %346 = vmatprep.subr.mxu0 0.0
        %347 = vmatpush1.msra.mxu0 %v344
        %348 = vmatprep.subr.mxu0 0.0
        %349 = vmatpush1.msra.mxu0 0.0
        %350 = vmatprep.subr.mxu0 0.0
        %351 = vmatpush1.msra.mxu0 0.0
        %352 = vmatprep.subr.mxu0 0.0
        %353 = vmatpush1.msra.mxu0 0.0
        %354 = vmatprep.subr.mxu0 0.0
        %355 = vmatpush1.msra.mxu0 0.0
        %356 = vmatprep.subr.mxu0 0.0
        %357 = vmatpush1.msra.mxu0 0.0
        %358 = vmatprep.subr.mxu0 0.0
        %359 = vmatpush1.msra.mxu0 0.0
        %360 = vmatprep.subr.mxu0 0.0
        %361 = vmatpush1.msra.mxu0 0.0
        %362 = vmatprep.subr.mxu0 0.0
        %363 = vmatpush1.msra.mxu0 0.0
        %364 = vmatprep.subr.mxu0 0.0
        %365 = vmatpush1.msra.mxu0 0.0
        %366 = vmatprep.subr.mxu0 0.0
        %367 = vmatpush1.msra.mxu0 0.0
        %368 = vmatprep.subr.mxu0 0.0
        %369 = vmatpush1.msra.mxu0 0.0
        %370 = vmatprep.subr.mxu0 0.0
        %371 = vmatpush1.msra.mxu0 0.0
        %372 = vmatprep.subr.mxu0 0.0
        %373 = vmatpush1.msra.mxu0 0.0
        %374 = vmatprep.subr.mxu0 0.0
        %375 = vmatpush1.msra.mxu0 0.0
        %376 = vmatprep.subr.mxu0 0.0
        %377 = vmatpush1.msra.mxu0 0.0
        %378 = vmatprep.subr.mxu0 0.0
        %379 = vmatpush1.msra.mxu0 0.0
        %380 = vmatprep.subr.mxu0 0.0
        %381 = vmatpush1.msra.mxu0 0.0
        %382 = vmatprep.subr.mxu0 0.0
        %383 = vmatpush1.msra.mxu0 0.0
        %384 = vmatprep.subr.mxu0 0.0
        %385 = vmatpush1.msra.mxu0 0.0
        %386 = vmatprep.subr.mxu0 0.0
        %387 = vmatpush1.msra.mxu0 0.0
        %388 = vmatprep.subr.mxu0 0.0
        %389 = vmatpush1.msra.mxu0 0.0
        %390 = vmatprep.subr.mxu0 0.0
        %391 = vmatpush1.msra.mxu0 0.0
        %392 = vmatprep.subr.mxu0 0.0
        %393 = vmatpush1.msra.mxu0 0.0
        %394 = vmatprep.subr.mxu0 0.0
        %395 = vmatpush1.msra.mxu0 0.0
        %396 = vmatprep.subr.mxu0 0.0
        %397 = vmatpush1.msra.mxu0 0.0
        %398 = vmatprep.subr.mxu0 0.0
        %399 = vmatpush1.msra.mxu0 0.0
        %400 = vmatprep.subr.mxu0 0.0
        %401 = vmatpush1.msra.mxu0 0.0
        %402 = vmatprep.subr.mxu0 0.0
        %403 = vmatpush1.msra.mxu0 0.0
        %404 = vmatprep.subr.mxu0 0.0
        %405 = vmatpush1.msra.mxu0 0.0
        %406 = vmatprep.subr.mxu0 0.0
        %407 = vmatpush1.msra.mxu0 0.0
        %408 = vmatprep.subr.mxu0 0.0
        %409 = vmatpush1.msra.mxu0 0.0
        %410 = vmatprep.mubr.f32.mxu0 0.0
        %411 = vmatmul.mubr.f32.gmra.mrb[0].mxu0 %v337
        %v412 = vpop.f32.mrb[0].mxu0
        %v413 = vadd.f32 %v333, %v412
        %v414 = vpop.f32.mrb[0].mxu0
        %415 = vmatprep.mubr.f32.mxu0 0.0
        %416 = vmatmul.mubr.f32.gmra.mrb[0].mxu0 %v340
        %v417 = vpop.f32.mrb[0].mxu0
        %v418 = vadd.f32 %v333, %v417
        %v419 = vpop.f32.mrb[0].mxu0
        %420 = vdwg.mxu0
        %v421 = vld [vmem:[%s316] sm:$0xff]
        %v422 = vld [vmem:[%s316 + $0x8] sm:$0xff]
        %v423 = vld [vmem:[%s316 + $0x10] sm:$0xf]
        %v424 = vld [vmem:[%s319] sm:$0x1]
        %v426 = vlaneseq
        %v427 = vshrl.u32 %v426, 7
        %v428 = vsub.s32 0, %v427
        %v429 = vrot.slane %v424, %v428
        %vm431 = vcmask 162816
        %v433 = vsel %vm431, %v413, 0
        %v436 = vsel %vm431, %v418, 0
        %vm438 = vcmask 1043456
        %v440 = vsel %vm438, %v423, 0
        %442 = vmatprep.subr.mxu0 0.0
        %443 = vmatpush1.msra.mxu0 %v421
        %444 = vmatprep.subr.mxu0 0.0
        %445 = vmatpush1.msra.mxu0 %v422
        %446 = vmatprep.subr.mxu0 0.0
        %447 = vmatpush1.msra.mxu0 %v440
        %448 = vmatprep.subr.mxu0 0.0
        %449 = vmatpush1.msra.mxu0 0.0
        %450 = vmatprep.subr.mxu0 0.0
        %451 = vmatpush1.msra.mxu0 0.0
        %452 = vmatprep.subr.mxu0 0.0
        %453 = vmatpush1.msra.mxu0 0.0
        %454 = vmatprep.subr.mxu0 0.0
        %455 = vmatpush1.msra.mxu0 0.0
        %456 = vmatprep.subr.mxu0 0.0
        %457 = vmatpush1.msra.mxu0 0.0
        %458 = vmatprep.subr.mxu0 0.0
        %459 = vmatpush1.msra.mxu0 0.0
        %460 = vmatprep.subr.mxu0 0.0
        %461 = vmatpush1.msra.mxu0 0.0
        %462 = vmatprep.subr.mxu0 0.0
        %463 = vmatpush1.msra.mxu0 0.0
        %464 = vmatprep.subr.mxu0 0.0
        %465 = vmatpush1.msra.mxu0 0.0
        %466 = vmatprep.subr.mxu0 0.0
        %467 = vmatpush1.msra.mxu0 0.0
        %468 = vmatprep.subr.mxu0 0.0
        %469 = vmatpush1.msra.mxu0 0.0
        %470 = vmatprep.subr.mxu0 0.0
        %471 = vmatpush1.msra.mxu0 0.0
        %472 = vmatprep.subr.mxu0 0.0
        %473 = vmatpush1.msra.mxu0 0.0
        %474 = vmatprep.subr.mxu0 0.0
        %475 = vmatpush1.msra.mxu0 0.0
        %476 = vmatprep.subr.mxu0 0.0
        %477 = vmatpush1.msra.mxu0 0.0
        %478 = vmatprep.subr.mxu0 0.0
        %479 = vmatpush1.msra.mxu0 0.0
        %480 = vmatprep.subr.mxu0 0.0
        %481 = vmatpush1.msra.mxu0 0.0
        %482 = vmatprep.subr.mxu0 0.0
        %483 = vmatpush1.msra.mxu0 0.0
        %484 = vmatprep.subr.mxu0 0.0
        %485 = vmatpush1.msra.mxu0 0.0
        %486 = vmatprep.subr.mxu0 0.0
        %487 = vmatpush1.msra.mxu0 0.0
        %488 = vmatprep.subr.mxu0 0.0
        %489 = vmatpush1.msra.mxu0 0.0
        %490 = vmatprep.subr.mxu0 0.0
        %491 = vmatpush1.msra.mxu0 0.0
        %492 = vmatprep.subr.mxu0 0.0
        %493 = vmatpush1.msra.mxu0 0.0
        %494 = vmatprep.subr.mxu0 0.0
        %495 = vmatpush1.msra.mxu0 0.0
        %496 = vmatprep.subr.mxu0 0.0
        %497 = vmatpush1.msra.mxu0 0.0
        %498 = vmatprep.subr.mxu0 0.0
        %499 = vmatpush1.msra.mxu0 0.0
        %500 = vmatprep.subr.mxu0 0.0
        %501 = vmatpush1.msra.mxu0 0.0
        %502 = vmatprep.subr.mxu0 0.0
        %503 = vmatpush1.msra.mxu0 0.0
        %504 = vmatprep.subr.mxu0 0.0
        %505 = vmatpush1.msra.mxu0 0.0
        %506 = vmatprep.mubr.f32.mxu0 0.0
        %507 = vmatmul.mubr.f32.gmra.mrb[0].mxu0 %v433
        %v508 = vpop.f32.mrb[0].mxu0
        %v509 = vadd.f32 %v429, %v508
        %v510 = vpop.f32.mrb[0].mxu0
        %511 = vmatprep.mubr.f32.mxu0 0.0
        %512 = vmatmul.mubr.f32.gmra.mrb[0].mxu0 %v436
        %v513 = vpop.f32.mrb[0].mxu0
        %v514 = vadd.f32 %v429, %v513
        %v515 = vpop.f32.mrb[0].mxu0
        %516 = vdwg.mxu0
        %vm517 = vcmask 7168
        %518 = vst.msk [vmem:[%s290] sm:$0xff] %vm517, %v509
        %519 = vst.msk [vmem:[%s290 + $0x8] sm:$0xff] %vm517, %v514
        %s520 = sand.u32 %s168, 1
        %s521 = sand.u32 %s168, 1
        %s522 = smul.addr %s521, 16
        %s523 = scalar_lea.vmem [#allocation2], %s522
        // Predicated region
        $region41: #{_group_forward.1} parent=39 // pred_check
          %p524 = pneg %p178
        $region42: #{_group_forward.1} parent=39 // pred_check_branch
          %526 = sbr.rel (%p524) target = $region44
        $region43: #{_group_forward.1} parent=39 // pred_region
          %s527 = smul.u32 2, %s20
          %s528 = ssub.s32 5, %s527
          %p529 = scmp.lt.s32.totalorder %s528, 2
          %s530 = scalar_select %p529, %s528, 2
          %s531 = smul.u32 128, %s530
          %p532 = scmp.ne.s32.totalorder 0, %s531
          %s533 = smul.addr %s21, 5
          %s534 = sadd.s32 %s527, %s533
          %s535 = smul.addr %s534, 8
          %s536 = scalar_lea.vmem %s5, %s535
          // Predicated region
          $region45: #{_group_forward.1} parent=43 // pred_check
            %p537 = pneg %p532
          $region46: #{_group_forward.1} parent=43 // pred_check_branch
            %539 = sbr.rel (%p537) target = $region48
          $region47: #{_group_forward.1} parent=43 // pred_region
            // Predicated region
            $region49: #{_group_forward.1} parent=47 // pred_check
              _
            $region50: #{_group_forward.1} parent=47 // pred_check_branch
              %541 = sbr.rel (0) target = $region52
            $region51: #{_group_forward.1} parent=47 // pred_region
              // Predicated region
              $region71: #{_group_forward.1} parent=51 // pred_check
                _
              $region72: #{_group_forward.1} parent=51 // pred_check_branch
                %592 = sbr.rel (0) target = $region74
              $region73: #{_group_forward.1} parent=51 // pred_region
                %s593 = sshrl.u32 %s530, 1
                // While loop
                $region75: #{_group_forward.1} parent=73 // loop_pre_header
                  _
                $region76: #{_group_forward.1} parent=73 // loop_header
                  %s595 = sphi 0, %s597
                  %p596 = scmp.ge.s32.totalorder %s595, %s593
                  %s600 = sphi 0, %s609
                  %s601 = sphi %s523, %s612
                  %s602 = sphi %s536, %s613
                $region77: #{_group_forward.1} parent=73 // loop_header_branch
                  %599 = sbr.rel (%p596) target = $region81
                $region78: #{_group_forward.1} parent=73 // loop_body
                  %v603 = vld [vmem:[%s601] sm:$0xff]
                  %604 = vst [vmem:[%s602] sm:$0xff] %v603
                  %v605 = vld [vmem:[%s601 + $0x8] sm:$0xff]
                  %606 = vst [vmem:[%s602 + $0x8] sm:$0xff] %v605
                  %s607 = sadd.s32 1, %s600
                  %p608 = scmp.ge.s32.totalorder %s607, %s593
                  %s609 = scalar_select %p608, 0, %s607
                  %s610 = smul.u32 %s609, 16
                  %s611 = smul.u32 %s609, 16
                  %s612 = scalar_lea.vmem %s523, %s610 [#allocation2]
                  %s613 = scalar_lea.vmem %s536, %s611
                $region79: #{_group_forward.1} parent=73 // loop_footer
                  %s597 = sadd.s32 %s595, 1
                $region80: #{_group_forward.1} parent=73 // loop_footer_branch
                  %594 = sbr.rel target = $region76
                $region81: #{_group_forward.1} parent=73 // loop_exit
                  _
                %s614 = sshrl.u32 %s530, 1
                %s615 = sand.u32 %s530, 1
                %s616 = smul.u32 %s614, 2
                %s617 = smul.u32 8, %s616
                %s618 = scalar_lea.vmem %s523, %s617 [#allocation2]
                %s619 = smul.u32 8, %s616
                %s620 = scalar_lea.vmem %s536, %s619
                // While loop
                $region82: #{_group_forward.1} parent=73 // loop_pre_header
                  _
                $region83: #{_group_forward.1} parent=73 // loop_header
                  %s622 = sphi 0, %s624
                  %p623 = scmp.ge.s32.totalorder %s622, %s615
                  %s627 = sphi 0, %s634
                  %s628 = sphi %s618, %s637
                  %s629 = sphi %s620, %s638
                $region84: #{_group_forward.1} parent=73 // loop_header_branch
                  %626 = sbr.rel (%p623) target = $region88
                $region85: #{_group_forward.1} parent=73 // loop_body
                  %v630 = vld [vmem:[%s628] sm:$0xff]
                  %631 = vst [vmem:[%s629] sm:$0xff] %v630
                  %s632 = sadd.s32 1, %s627
                  %p633 = scmp.ge.s32.totalorder %s632, %s615
                  %s634 = scalar_select %p633, 0, %s632
                  %s635 = smul.u32 %s634, 8
                  %s636 = smul.u32 %s634, 8
                  %s637 = scalar_lea.vmem %s618, %s635 [#allocation2]
                  %s638 = scalar_lea.vmem %s620, %s636
                $region86: #{_group_forward.1} parent=73 // loop_footer
                  %s624 = sadd.s32 %s622, 1
                $region87: #{_group_forward.1} parent=73 // loop_footer_branch
                  %621 = sbr.rel target = $region83
                $region88: #{_group_forward.1} parent=73 // loop_exit
                  _
              $region74: #{_group_forward.1} parent=51 // pred_fallthru
                _
              // Predicated region
              $region89: #{_group_forward.1} parent=51 // pred_check
                _
              $region90: #{_group_forward.1} parent=51 // pred_check_branch
                %640 = sbr.rel target = $region92
              $region91: #{_group_forward.1} parent=51 // pred_region
                _
              $region92: #{_group_forward.1} parent=51 // pred_fallthru
                _
            $region52: #{_group_forward.1} parent=47 // pred_fallthru
              _
            // Predicated region
            $region53: #{_group_forward.1} parent=47 // pred_check
              _
            $region54: #{_group_forward.1} parent=47 // pred_check_branch
              %543 = sbr.rel target = $region56
            $region55: #{_group_forward.1} parent=47 // pred_region
              %s545 = sshrl.u32 %s530, 1
              // While loop
              $region57: #{_group_forward.1} parent=55 // loop_pre_header
                _
              $region58: #{_group_forward.1} parent=55 // loop_header
                %s547 = sphi 0, %s549
                %p548 = scmp.ge.s32.totalorder %s547, %s545
                %s552 = sphi 0, %s561
                %s553 = sphi %s523, %s564
                %s554 = sphi %s536, %s565
              $region59: #{_group_forward.1} parent=55 // loop_header_branch
                %551 = sbr.rel (%p548) target = $region63
              $region60: #{_group_forward.1} parent=55 // loop_body
                %v555 = vld [vmem:[%s553] sm:$0xff]
                %556 = vst [vmem:[%s554] sm:$0xff] %v555
                %v557 = vld [vmem:[%s553 + $0x8] sm:$0xff]
                %558 = vst [vmem:[%s554 + $0x8] sm:$0xff] %v557
                %s559 = sadd.s32 1, %s552
                %p560 = scmp.ge.s32.totalorder %s559, %s545
                %s561 = scalar_select %p560, 0, %s559
                %s562 = smul.u32 %s561, 16
                %s563 = smul.u32 %s561, 16
                %s564 = scalar_lea.vmem %s523, %s562 [#allocation2]
                %s565 = scalar_lea.vmem %s536, %s563
              $region61: #{_group_forward.1} parent=55 // loop_footer
                %s549 = sadd.s32 %s547, 1
              $region62: #{_group_forward.1} parent=55 // loop_footer_branch
                %546 = sbr.rel target = $region58
              $region63: #{_group_forward.1} parent=55 // loop_exit
                _
              %s566 = sshrl.u32 %s530, 1
              %s567 = sand.u32 %s530, 1
              %s568 = smul.u32 %s566, 2
              %s569 = smul.u32 8, %s568
              %s570 = scalar_lea.vmem %s523, %s569 [#allocation2]
              %s571 = smul.u32 8, %s568
              %s572 = scalar_lea.vmem %s536, %s571
              // While loop
              $region64: #{_group_forward.1} parent=55 // loop_pre_header
                _
              $region65: #{_group_forward.1} parent=55 // loop_header
                %s574 = sphi 0, %s576
                %p575 = scmp.ge.s32.totalorder %s574, %s567
                %s579 = sphi 0, %s586
                %s580 = sphi %s570, %s589
                %s581 = sphi %s572, %s590
              $region66: #{_group_forward.1} parent=55 // loop_header_branch
                %578 = sbr.rel (%p575) target = $region70
              $region67: #{_group_forward.1} parent=55 // loop_body
                %v582 = vld [vmem:[%s580] sm:$0xff]
                %583 = vst [vmem:[%s581] sm:$0xff] %v582
                %s584 = sadd.s32 1, %s579
                %p585 = scmp.ge.s32.totalorder %s584, %s567
                %s586 = scalar_select %p585, 0, %s584
                %s587 = smul.u32 %s586, 8
                %s588 = smul.u32 %s586, 8
                %s589 = scalar_lea.vmem %s570, %s587 [#allocation2]
                %s590 = scalar_lea.vmem %s572, %s588
              $region68: #{_group_forward.1} parent=55 // loop_footer
                %s576 = sadd.s32 %s574, 1
              $region69: #{_group_forward.1} parent=55 // loop_footer_branch
                %573 = sbr.rel target = $region65
              $region70: #{_group_forward.1} parent=55 // loop_exit
                _
            $region56: #{_group_forward.1} parent=47 // pred_fallthru
              _
          $region48: #{_group_forward.1} parent=43 // pred_fallthru
            _
          %641 = vnop
        $region44: #{_group_forward.1} parent=39 // pred_fallthru
          _
      $region40: #{_group_forward.1} parent=5 // pred_fallthru
        _
      %p642 = scmp.le.s32.totalorder 2, %s11
      // Predicated region
      $region93: #{_group_forward.1} parent=5 // pred_check
        %p643 = pneg %p642
      $region94: #{_group_forward.1} parent=5 // pred_check_branch
        %645 = sbr.rel (%p643) target = $region96
      $region95: #{_group_forward.1} parent=5 // pred_region
        %s646 = ssub.s32 %s11, 2
        // Predicated region
        $region97: #{_group_forward.1} parent=95 // pred_check
          %p647 = pneg %p184
        $region98: #{_group_forward.1} parent=95 // pred_check_branch
          %649 = sbr.rel (%p647) target = $region100
        $region99: #{_group_forward.1} parent=95 // pred_region
          %s650 = sand.u32 %s169, 1
          %s651 = sand.u32 %s169, 1
          %s652 = smul.addr %s651, 16
          %s653 = scalar_lea.vmem [#allocation2], %s652
        $region100: #{_group_forward.1} parent=95 // pred_fallthru
          _
      $region96: #{_group_forward.1} parent=5 // pred_fallthru
        _
    $region6: #{_group_forward.1} parent=1 // loop_footer
      %s15 = sadd.s32 1, %s11
    $region7: #{_group_forward.1} parent=1 // loop_footer_branch
      %10 = sbr.rel target = $region3
    $region8: #{_group_forward.1} parent=1 // loop_exit
      _

</llo_original>
